<compile_context>
chip_gen: v7x
topology: tpu7x:2x2x1
jax: 0.10.0
libtpu: 0.0.40
codegen_flags: <defaults>
</compile_context>

<pallas_src>
import jax
import jax.numpy as jnp
from jax.experimental import pallas as pl
from jax.experimental.pallas import tpu as pltpu


def _identity_kernel(x_ref, o_ref):
    # Pure pass-through on the current VMEM tile (VPU copy of a large slab).
    o_ref[...] = x_ref[...]


def _flatten_lane_dense(x):
    """Reshape to 2-D with a lane-dense last axis (multiple of 128 when possible)."""
    n = x.size
    for cols in (2048, 1024, 512, 256, 128):
        if n % cols == 0:
            return x.reshape(n // cols, cols)
    if x.ndim >= 2:
        return x.reshape(n // x.shape[-1], x.shape[-1])
    return x.reshape(1, n)


def base_model_forward(x):
    """Pallas implementation of BaseModel's (abstract) forward: identity."""
    orig_shape = x.shape
    dtype = x.dtype

    # Rank-0 or empty input: nothing worth launching a kernel for.
    if x.ndim == 0 or x.size == 0:
        return x

    x2d = _flatten_lane_dense(x)
    R, C = x2d.shape
    itemsize = jnp.dtype(dtype).itemsize

    # dtype-aware minimum sublane count: 8 (f32), 16 (bf16), 32 (int8/fp8).
    sub = max(8, 32 // itemsize)

    # ~2 MiB tiles: with double-buffered input + output (4 copies in flight) this
    # stays inside the default scoped VMEM on every generation (v5e 16 MiB,
    # v6e 32 MiB, v7x 32 MiB) — no vmem_limit override needed.
    target_bytes = 2 * 1024 * 1024

    # Lane tile: large multiple of 128, or the full dim (always legal).
    if C % 128 == 0:
        TC = min(C, 2048)
    else:
        TC = C

    # Sublane tile: fill the byte budget with a multiple of `sub`, or the full dim.
    rows_budget = max(1, target_bytes // (TC * itemsize))
    if rows_budget >= R:
        TR = R
    else:
        TR = max(sub, (rows_budget // sub) * sub)

    grid = (pl.cdiv(R, TR), pl.cdiv(C, TC))

    out2d = pl.pallas_call(
        _identity_kernel,
        out_shape=jax.ShapeDtypeStruct((R, C), dtype),
        grid_spec=pltpu.PrefetchScalarGridSpec(
            num_scalar_prefetch=0,
            grid=grid,
            in_specs=[pl.BlockSpec((TR, TC), lambda i, j: (i, j))],
            out_specs=pl.BlockSpec((TR, TC), lambda i, j: (i, j)),
        ),
        compiler_params=pltpu.CompilerParams(
            dimension_semantics=("parallel", "parallel")
        ),
        input_output_aliases={0: 0},
        cost_estimate=pl.CostEstimate(
            flops=0, transcendentals=0, bytes_accessed=2 * R * C * itemsize
        ),
    )(x2d)

    return out2d.reshape(orig_shape)


def base_model_summary():
    """Analogue of BaseModel.summary(): the base class registers no parameters."""
    params = 0
    print("Trainable parameters: {}".format(params))
    return params


if __name__ == "__main__":
    key = jax.random.PRNGKey(0)
    # NCHW input consistent with typical subclasses: batch=2, channels=4, 16x16 spatial.
    x = jax.random.normal(key, (2, 4, 16, 16), dtype=jnp.float32)

    fwd = jax.jit(base_model_forward)
    y = fwd(x)
    y = jax.block_until_ready(y)

    assert y.shape == x.shape and y.dtype == x.dtype
    assert bool(jnp.allclose(y, x)), "identity forward mismatch"

    base_model_summary()
    print("KERNEL_OK")
</pallas_src>

<mosaic_0001>
module attributes {stable_mosaic.version = 11 : i64} {
  func.func @_identity_kernel(%arg0: i32, %arg1: i32, %arg2: memref<1x2048xf32, #tpu.memory_space<vmem>>, %arg3: memref<1x2048xf32, #tpu.memory_space<vmem>>) attributes {dimension_semantics = [#tpu.dimension_semantics<parallel>, #tpu.dimension_semantics<parallel>], iteration_bounds = array<i64: 1, 1>, scalar_prefetch = 0 : i64, scratch_operands = 0 : i64, tpu.core_type = #tpu.core_type<tc>, window_params = [{transform_indices = @transform_0, window_bounds = array<i64: 1, 2048>}, {transform_indices = @transform_1, window_bounds = array<i64: 1, 2048>}]} {
    %c0 = arith.constant 0 : index
    %c0_0 = arith.constant 0 : index
    %0 = vector.load %arg2[%c0, %c0_0] : memref<1x2048xf32, #tpu.memory_space<vmem>>, vector<1x2048xf32>
    %c0_1 = arith.constant 0 : index
    %c0_2 = arith.constant 0 : index
    %1 = vector.load %arg3[%c0_1, %c0_2] : memref<1x2048xf32, #tpu.memory_space<vmem>>, vector<1x2048xf32>
    tpu.vector_store %arg3[%c0_1, %c0_2], %0 {strides = array<i32>} : memref<1x2048xf32, #tpu.memory_space<vmem>>, vector<1x2048xf32>,
    return
  }
  func.func @transform_0(%arg0: i32, %arg1: i32) -> (i32, i32) {
    %c0_i32 = arith.constant 0 : i32
    return %arg0, %arg1 : i32, i32
  }
  func.func @transform_1(%arg0: i32, %arg1: i32) -> (i32, i32) {
    %c0_i32 = arith.constant 0 : i32
    return %arg0, %arg1 : i32, i32
  }
}

</mosaic_0001>

<llo_original>
// kernel: base_model_forward.1
$region0: #{base_model_forward.1}
  #allocation0 [shape = 'u32[]', space=smem, size = 0x4, offset = 0x4, fixed_abs, tag = 'smem constant byte address 0x4 - core index']
  #allocation1 [shape = 'u32[144,128]{1,0:T(1,128)}', space=vmem, size = 0x12000, scoped, tag = 'internal scratch']
  %s0 = inlined_call_operand.vmem [shape: f32[1,2048], index: 0, kind: input, shape index: {}, may-alias: {0,1}]
  %s1 = inlined_call_operand.vmem [shape: f32[1,2048], index: 1, kind: output, shape index: {}, may-alias: {0,1}]
  %s2 = sld [smem:[#allocation0]]
  $region14: #{base_model_forward.1} parent=0
    _
  %s4 = ssub.s32 1, %s2
  %s5 = scalar_select 0, %s4, %s2
  // Predicated region
  $region2: #{base_model_forward.1} parent=0 // pred_check
    _
  $region3: #{base_model_forward.1} parent=0 // pred_check_branch
    %7 = sbr.rel (0) target = $region5
  $region4: #{base_model_forward.1} parent=0 // pred_region
    _
  $region5: #{base_model_forward.1} parent=0 // pred_fallthru
    _
  %v8 = vld [vmem:[%s0] sm:$0xff]
  %v9 = vld [vmem:[%s0 + $0x8] sm:$0xff]
  %10 = vst [vmem:[%s1] sm:$0xff] %v8
  %11 = vst [vmem:[%s1 + $0x8] sm:$0xff] %v9
  // Predicated region
  $region6: #{base_model_forward.1} parent=0 // pred_check
    _
  $region7: #{base_model_forward.1} parent=0 // pred_check_branch
    %13 = sbr.rel (0) target = $region9
  $region8: #{base_model_forward.1} parent=0 // pred_region
    _
  $region9: #{base_model_forward.1} parent=0 // pred_fallthru
    _
  // Predicated region
  $region10: #{base_model_forward.1} parent=0 // pred_check
    _
  $region11: #{base_model_forward.1} parent=0 // pred_check_branch
    %15 = sbr.rel (0) target = $region13
  $region12: #{base_model_forward.1} parent=0 // pred_region
    _
  $region13: #{base_model_forward.1} parent=0 // pred_fallthru
    _

</llo_original>
